<compile_context>
chip_gen: v7x
topology: tpu7x:2x2x1
jax: 0.10.0
libtpu: 0.0.40
codegen_flags: <defaults>
</compile_context>

<pallas_src>
import jax
import jax.numpy as jnp
from jax.experimental import pallas as pl
from jax.experimental.pallas import tpu as pltpu


def _round_up(a, b):
    return (a + b - 1) // b * b


# ---------------------------------------------------------------------------
# Kernel 1: one-shot weight reconstruction  W = U @ diag(S) @ V   (C x C).
# Runs once (no grid) so the C^3 matmul is NOT repeated per streamed tile.
# ---------------------------------------------------------------------------
def _build_weight_kernel(u_ref, s_ref, v_ref, w_ref):
    # U @ diag(S) == scale the columns of U by S (S passed as a (1, C) row).
    w = jnp.dot(u_ref[...] * s_ref[...], v_ref[...],
                preferred_element_type=jnp.float32)
    # size_in == size_out and k == 1, so .view(C, C, 1, 1) keeps W[o, i] as is.
    # (If x.dtype is narrower than f32, W is cast here -- inference-grade.)
    w_ref[...] = w.astype(w_ref.dtype)


# ---------------------------------------------------------------------------
# Kernel 2: channel-major 1x1 conv, batch-folded:
#   out[b, :, s] = W @ x[b, :, s] + bias      for b in the Nb-image block
#   w_ref : (C_out, C_in)    resident weight (same block every grid step)
#   b_ref : (C_out, 1)       bias column (lane-broadcast)
#   x_ref : (Nb, C_in, Ts)   spatial positions on the lane axis (lane-dense)
#   o_ref : (Nb, C_out, Ts)  full-width lane-dense vector stores
# ---------------------------------------------------------------------------
def _conv1x1_cm_kernel(w_ref, b_ref, x_ref, o_ref):
    w = w_ref[...]
    b = b_ref[...]
    for i in range(x_ref.shape[0]):               # Nb is static & small: unrolled
        acc = jnp.dot(w, x_ref[i], preferred_element_type=jnp.float32)
        o_ref[i] = (acc + b).astype(o_ref.dtype)


def _choose_tiling(N, C, S_sp, itemsize, tile_budget, max_nb=16):
    """Pick (Nb, tile_s, S_pad, n_spatial_tiles)."""
    S_128 = _round_up(S_sp, 128)
    bytes_full_spatial = C * S_sp * itemsize

    if bytes_full_spatial <= tile_budget:
        # Whole spatial axis fits in one lane tile -> no pad, no output slice.
        tile_s, S_pad, n_s = S_sp, S_sp, 1
        nb = max(1, min(N, max_nb, tile_budget // bytes_full_spatial))
        while N % nb:
            nb -= 1
        # Guarantee >=2 grid steps when it costs nothing (v7x has 2 TCs).
        if N // nb < 2:
            if N >= 2:
                nb = max(1, N // 2)
                while N % nb:
                    nb -= 1
            elif S_sp % 256 == 0:
                tile_s, S_pad, n_s = S_sp // 2, S_sp, 2   # pad-free 2-way split
        return nb, tile_s, S_pad, n_s

    # Spatial axis must be split into lane tiles; one image per grid step.
    max_d = max(1, (tile_budget // (C * itemsize)) // 128)
    k = S_128 // 128
    best = 1
    for d in range(1, min(k, max_d) + 1):
        if k % d == 0:
            best = d
    # Prefer a tile that divides S_128 (pad <= 127 lanes) as long as it is
    # big enough to amortize per-step overhead; otherwise accept a padded
    # edge tile at the budget size.
    if best == k or best * 128 * C * itemsize >= (2 << 20):
        tile_s = best * 128
    else:
        tile_s = min(max_d, k) * 128
    S_pad = _round_up(S_sp, tile_s)
    return 1, tile_s, S_pad, S_pad // tile_s


def conv2d_usv_forward(x, U, S, V, bias=None, stride=1, padding=0):
    """x: NCHW.  U,V: (C,C).  S,bias: (C,).  Returns NCHW output."""
    N, C, H, W = x.shape
    assert U.shape == (C, C) and V.shape == (C, C) and S.shape == (C,), (
        "only the size_in == size_out, kernel_size == 1 configuration is "
        "executable by the original PyTorch forward")
    if bias is None:
        bias = jnp.zeros((C,), x.dtype)

    itemsize = jnp.dtype(x.dtype).itemsize

    # --- generation-aware VMEM budgeting ------------------------------------
    vmem_cap = 64 << 20                           # conservative default (v7x)
    try:
        vmem_cap = int(getattr(pltpu.get_tpu_info(), "vmem_capacity_bytes",
                               vmem_cap)) or vmem_cap
    except Exception:
        pass
    usable = (vmem_cap * 3) // 4                  # leave compiler headroom
    w_bytes = C * C * itemsize
    # x + out tiles are double-buffered (4x tile bytes); W counted at 2x as
    # insurance in case single-buffering is not honored.
    tile_budget = max(1 << 20,
                      min(16 << 20, (usable - 2 * w_bytes - (2 << 20)) // 4))

    # --- one-time weight reconstruction (hoisted out of the streaming loop) --
    wbuild_vmem = int(min(max(6 * C * C * itemsize + (4 << 20), 16 << 20),
                          usable))
    w = pl.pallas_call(
        _build_weight_kernel,
        out_shape=jax.ShapeDtypeStruct((C, C), x.dtype),
        compiler_params=pltpu.CompilerParams(vmem_limit_bytes=wbuild_vmem),
    )(U, S.reshape(1, C), V)

    # --- spatial handling; zero extra HBM copies for stride=1 / padding=0 ----
    if padding:
        x = jnp.pad(x, ((0, 0), (0, 0), (padding, padding), (padding, padding)))
    Hp, Wp = H + 2 * padding, W + 2 * padding
    H_out = (Hp - 1) // stride + 1
    W_out = (Wp - 1) // stride + 1
    if stride != 1:
        # TODO(synk): strided 1x1 convs pay one extra HBM pass here; an
        # index_map row selection + in-kernel pl.ds column stride would avoid it.
        x = x[:, :, ::stride, ::stride][:, :, :H_out, :W_out]

    S_sp = H_out * W_out
    xf = x.reshape(N, C, S_sp)          # NCHW -> (N, C, H*W): contiguous, free

    Nb, tile_s, S_pad, n_s = _choose_tiling(N, C, S_sp, itemsize, tile_budget)
    if S_pad != S_sp:
        xf = jnp.pad(xf, ((0, 0), (0, 0), (0, S_pad - S_sp)))

    grid = (N // Nb, n_s)

    tile_bytes = Nb * C * tile_s * itemsize
    vmem_est = 4 * tile_bytes + 2 * w_bytes + C * itemsize + (2 << 20)
    vmem_limit = int(min(max(vmem_est, 16 << 20), usable))

    bias2d = bias.reshape(C, 1)

    def run(single_buffer_w):
        if single_buffer_w:
            w_spec = pl.BlockSpec((C, C), lambda n, s: (0, 0),
                                  pipeline_mode=pl.Buffered(1))
        else:
            w_spec = pl.BlockSpec((C, C), lambda n, s: (0, 0))
        return pl.pallas_call(
            _conv1x1_cm_kernel,
            out_shape=jax.ShapeDtypeStruct((N, C, S_pad), x.dtype),
            grid_spec=pltpu.PrefetchScalarGridSpec(
                num_scalar_prefetch=0,
                grid=grid,
                in_specs=[
                    w_spec,                                            # W
                    pl.BlockSpec((C, 1), lambda n, s: (0, 0)),         # bias
                    pl.BlockSpec((Nb, C, tile_s), lambda n, s: (n, 0, s)),  # x
                ],
                out_specs=pl.BlockSpec((Nb, C, tile_s), lambda n, s: (n, 0, s)),
            ),
            compiler_params=pltpu.CompilerParams(
                dimension_semantics=("parallel", "parallel"),
                vmem_limit_bytes=vmem_limit),
        )(w, bias2d, xf)

    try:
        out = run(True)
    except Exception:
        # Fallback if pipeline_mode=Buffered(1) is unsupported in this build.
        out = run(False)

    if S_pad != S_sp:
        out = out[:, :, :S_sp]
    return out.reshape(N, C, H_out, W_out)


if __name__ == "__main__":
    # Deterministic synthetic parameters / inputs (torch.Tensor(...) in the
    # module's __init__ is uninitialized, so any deterministic init is valid).
    key = jax.random.PRNGKey(0)
    kU, kS, kV, kb, kx = jax.random.split(key, 5)

    N, C, H, W = 2, 8, 16, 16       # size_in == size_out == C, kernel_size == 1
    stride, padding = 1, 0

    U = jax.random.normal(kU, (C, C), jnp.float32) * 0.1
    S = jax.random.normal(kS, (C,), jnp.float32)
    V = jax.random.normal(kV, (C, C), jnp.float32) * 0.1
    bias = jax.random.normal(kb, (C,), jnp.float32)
    x = jax.random.normal(kx, (N, C, H, W), jnp.float32)

    out = jax.block_until_ready(
        conv2d_usv_forward(x, U, S, V, bias, stride=stride, padding=padding))

    # Pure-JAX reference of the exact PyTorch forward.
    weight = ((U * S[None, :]) @ V).reshape(C, C, 1, 1)
    ref = jax.lax.conv_general_dilated(
        x, weight, window_strides=(stride, stride),
        padding=[(padding, padding), (padding, padding)],
        dimension_numbers=("NCHW", "OIHW", "NCHW"))
    ref = ref + bias.reshape(1, C, 1, 1)

    assert out.shape == ref.shape
    assert jnp.allclose(out, ref, atol=1e-4, rtol=1e-4), "mismatch vs reference"
    print("KERNEL_OK")
</pallas_src>

<mosaic_0001>
module attributes {stable_mosaic.version = 11 : i64} {
  func.func @_build_weight_kernel(%arg0: memref<8x8xf32, #tpu.memory_space<vmem>>, %arg1: memref<1x8xf32, #tpu.memory_space<vmem>>, %arg2: memref<8x8xf32, #tpu.memory_space<vmem>>, %arg3: memref<8x8xf32, #tpu.memory_space<vmem>>) attributes {dimension_semantics = [], scalar_prefetch = 0 : i64, scratch_operands = 0 : i64, tpu.core_type = #tpu.core_type<tc>} {
    %c0 = arith.constant 0 : index
    %c0_0 = arith.constant 0 : index
    %0 = vector.load %arg0[%c0, %c0_0] : memref<8x8xf32, #tpu.memory_space<vmem>>, vector<8x8xf32>
    %c0_1 = arith.constant 0 : index
    %c0_2 = arith.constant 0 : index
    %1 = vector.load %arg1[%c0_1, %c0_2] : memref<1x8xf32, #tpu.memory_space<vmem>>, vector<1x8xf32>
    %2 = vector.broadcast %1 : vector<1x8xf32> to vector<8x8xf32>
    %3 = arith.mulf %0, %2 : vector<8x8xf32>
    %c0_3 = arith.constant 0 : index
    %c0_4 = arith.constant 0 : index
    %4 = vector.load %arg2[%c0_3, %c0_4] : memref<8x8xf32, #tpu.memory_space<vmem>>, vector<8x8xf32>
    %cst = arith.constant dense<0.000000e+00> : vector<8x8xf32>
    %5 = tpu.matmul %3, %4, %cst {dimension_numbers = #tpu.dot_dimension_numbers<[1], [0], [0], [1], [0, 0, 1, 1], [], []>} : vector<8x8xf32>, vector<8x8xf32>, vector<8x8xf32> -> vector<8x8xf32>
    %c0_5 = arith.constant 0 : index
    %c0_6 = arith.constant 0 : index
    %6 = vector.load %arg3[%c0_5, %c0_6] : memref<8x8xf32, #tpu.memory_space<vmem>>, vector<8x8xf32>
    tpu.vector_store %arg3[%c0_5, %c0_6], %5 {strides = array<i32>} : memref<8x8xf32, #tpu.memory_space<vmem>>, vector<8x8xf32>,
    return
  }
}

</mosaic_0001>

<llo_original>
// kernel: tpu_custom_call.1
$region0: #{tpu_custom_call.1}
  #allocation0 [shape = 'u32[]', space=smem, size = 0x4, offset = 0x4, fixed_abs, tag = 'smem constant byte address 0x4 - core index']
  #allocation1 [shape = 'u32[144,128]{1,0:T(1,128)}', space=vmem, size = 0x12000, scoped, tag = 'internal scratch']
  %s0 = inlined_call_operand.hbm [shape: f32[8,8], index: 0, kind: input, shape index: {}]
  %s1 = inlined_call_operand.vmem [shape: f32[1,8], index: 1, kind: input, shape index: {}]
  %s2 = inlined_call_operand.hbm [shape: f32[8,8], index: 2, kind: input, shape index: {}]
  %s3 = inlined_call_operand.hbm [shape: f32[8,8], index: 3, kind: output, shape index: {}]
  %s4 = sld [smem:[#allocation0]]
  $region30: #{tpu_custom_call.1} parent=0
    _
  %s6 = ssub.s32 1, %s4
  %s7 = scalar_select 0, %s6, %s4
  $region1: #{tpu_custom_call.1} parent=0
    #allocation2 [shape = 'u8[4096]{0}', space=vmem, size = 0x1000, scoped, tag = 'input window, operand 0, single buffered']
    #allocation3 [shape = 's32[1]{0}', space=sflag, size = 0x4, scoped, tag = 'scoped memory for tpu_custom_call.1']
    #allocation4 [shape = 's32[1]{0}', space=sflag, size = 0x4, scoped, tag = 'scoped memory for tpu_custom_call.1']
    #allocation5 [shape = 'u8[4096]{0}', space=vmem, size = 0x1000, scoped, tag = 'input window, operand 2, single buffered']
    #allocation6 [shape = 's32[1]{0}', space=sflag, size = 0x4, scoped, tag = 'scoped memory for tpu_custom_call.1']
    #allocation7 [shape = 'u8[4096]{0}', space=vmem, size = 0x1000, scoped, tag = 'output window, operand 0, single buffered']
    %8 = vsyncpa [#allocation3], 0
    %9 = vsyncpa [#allocation6], 0
    %10 = vsyncpa [#allocation4], 0
    // Predicated region
    $region2: #{tpu_custom_call.1} parent=1 // pred_check
      _
    $region3: #{tpu_custom_call.1} parent=1 // pred_check_branch
      %12 = sbr.rel (0) target = $region5
    $region4: #{tpu_custom_call.1} parent=1 // pred_region
      %s14 = ssub.s32 128, 128
      %15 = vsyncadd [#allocation3], %s14
      %s17 = sshll.u32 [#allocation2], 4
      %s18 = int_to_ptr.vmem [resolvable:$true] %s17
      %20 = dma.hbm_to_vmem [thread:$0]  %s0, 128, %s18, [#allocation3]
    $region5: #{tpu_custom_call.1} parent=1 // pred_fallthru
      _
    // Predicated region
    $region6: #{tpu_custom_call.1} parent=1 // pred_check
      _
    $region7: #{tpu_custom_call.1} parent=1 // pred_check_branch
      %22 = sbr.rel (0) target = $region9
    $region8: #{tpu_custom_call.1} parent=1 // pred_region
      _
    $region9: #{tpu_custom_call.1} parent=1 // pred_fallthru
      _
    // Predicated region
    $region10: #{tpu_custom_call.1} parent=1 // pred_check
      _
    $region11: #{tpu_custom_call.1} parent=1 // pred_check_branch
      %24 = sbr.rel (0) target = $region13
    $region12: #{tpu_custom_call.1} parent=1 // pred_region
      %s26 = ssub.s32 128, 128
      %27 = vsyncadd [#allocation6], %s26
      %s29 = sshll.u32 [#allocation5], 4
      %s30 = int_to_ptr.vmem [resolvable:$true] %s29
      %32 = dma.hbm_to_vmem [thread:$0]  %s2, 128, %s30, [#allocation6]
    $region13: #{tpu_custom_call.1} parent=1 // pred_fallthru
      _
    // Predicated region
    $region14: #{tpu_custom_call.1} parent=1 // pred_check
      _
    $region15: #{tpu_custom_call.1} parent=1 // pred_check_branch
      %34 = sbr.rel (0) target = $region17
    $region16: #{tpu_custom_call.1} parent=1 // pred_region
      %35 = dma.done [#allocation3], 128
    $region17: #{tpu_custom_call.1} parent=1 // pred_fallthru
      _
    // Predicated region
    $region18: #{tpu_custom_call.1} parent=1 // pred_check
      _
    $region19: #{tpu_custom_call.1} parent=1 // pred_check_branch
      %37 = sbr.rel (0) target = $region21
    $region20: #{tpu_custom_call.1} parent=1 // pred_region
      %38 = dma.done [#allocation6], 128
    $region21: #{tpu_custom_call.1} parent=1 // pred_fallthru
      _
    %v39 = vld [vmem:[#allocation2] sm:$0xff]
    %v40 = vld [vmem:[%s1] sm:$0x1]
    %v42 = vlaneseq
    %v43 = vshrl.u32 %v42, 7
    %v44 = vsub.s32 0, %v43
    %v45 = vrot.slane %v40, %v44
    %v47 = vmul.f32 %v39, %v45
    %v48 = vld [vmem:[#allocation5] sm:$0xff]
    %vm49 = vcmask 64512
    %v51 = vsel %vm49, %v47, 0
    %53 = vmatprep.subr.mxu0 0.0
    %54 = vmatpush1.msra.mxu0 %v48
    %55 = vmatprep.subr.mxu0 0.0
    %56 = vmatpush1.msra.mxu0 0.0
    %57 = vmatprep.subr.mxu0 0.0
    %58 = vmatpush1.msra.mxu0 0.0
    %59 = vmatprep.subr.mxu0 0.0
    %60 = vmatpush1.msra.mxu0 0.0
    %61 = vmatprep.subr.mxu0 0.0
    %62 = vmatpush1.msra.mxu0 0.0
    %63 = vmatprep.subr.mxu0 0.0
    %64 = vmatpush1.msra.mxu0 0.0
    %65 = vmatprep.subr.mxu0 0.0
    %66 = vmatpush1.msra.mxu0 0.0
    %67 = vmatprep.subr.mxu0 0.0
    %68 = vmatpush1.msra.mxu0 0.0
    %69 = vmatprep.subr.mxu0 0.0
    %70 = vmatpush1.msra.mxu0 0.0
    %71 = vmatprep.subr.mxu0 0.0
    %72 = vmatpush1.msra.mxu0 0.0
    %73 = vmatprep.subr.mxu0 0.0
    %74 = vmatpush1.msra.mxu0 0.0
    %75 = vmatprep.subr.mxu0 0.0
    %76 = vmatpush1.msra.mxu0 0.0
    %77 = vmatprep.subr.mxu0 0.0
    %78 = vmatpush1.msra.mxu0 0.0
    %79 = vmatprep.subr.mxu0 0.0
    %80 = vmatpush1.msra.mxu0 0.0
    %81 = vmatprep.subr.mxu0 0.0
    %82 = vmatpush1.msra.mxu0 0.0
    %83 = vmatprep.subr.mxu0 0.0
    %84 = vmatpush1.msra.mxu0 0.0
    %85 = vmatprep.subr.mxu0 0.0
    %86 = vmatpush1.msra.mxu0 0.0
    %87 = vmatprep.subr.mxu0 0.0
    %88 = vmatpush1.msra.mxu0 0.0
    %89 = vmatprep.subr.mxu0 0.0
    %90 = vmatpush1.msra.mxu0 0.0
    %91 = vmatprep.subr.mxu0 0.0
    %92 = vmatpush1.msra.mxu0 0.0
    %93 = vmatprep.subr.mxu0 0.0
    %94 = vmatpush1.msra.mxu0 0.0
    %95 = vmatprep.subr.mxu0 0.0
    %96 = vmatpush1.msra.mxu0 0.0
    %97 = vmatprep.subr.mxu0 0.0
    %98 = vmatpush1.msra.mxu0 0.0
    %99 = vmatprep.subr.mxu0 0.0
    %100 = vmatpush1.msra.mxu0 0.0
    %101 = vmatprep.subr.mxu0 0.0
    %102 = vmatpush1.msra.mxu0 0.0
    %103 = vmatprep.subr.mxu0 0.0
    %104 = vmatpush1.msra.mxu0 0.0
    %105 = vmatprep.subr.mxu0 0.0
    %106 = vmatpush1.msra.mxu0 0.0
    %107 = vmatprep.subr.mxu0 0.0
    %108 = vmatpush1.msra.mxu0 0.0
    %109 = vmatprep.subr.mxu0 0.0
    %110 = vmatpush1.msra.mxu0 0.0
    %111 = vmatprep.subr.mxu0 0.0
    %112 = vmatpush1.msra.mxu0 0.0
    %113 = vmatprep.subr.mxu0 0.0
    %114 = vmatpush1.msra.mxu0 0.0
    %115 = vmatprep.subr.mxu0 0.0
    %116 = vmatpush1.msra.mxu0 0.0
    %117 = vmatprep.mubr.f32.mxu0 0.0
    %118 = vmatmul.mubr.f32.gmra.mrb[0].mxu0 %v51
    %v119 = vpop.f32.mrb[0].mxu0
    %v120 = vadd.f32 0.0, %v119
    %v121 = vpop.f32.mrb[0].mxu0
    %122 = vdwg.mxu0
    %123 = vst.msk [vmem:[#allocation7] sm:$0xff] %vm49, %v120
    // Predicated region
    $region22: #{tpu_custom_call.1} parent=1 // pred_check
      _
    $region23: #{tpu_custom_call.1} parent=1 // pred_check_branch
      %125 = sbr.rel (0) target = $region25
    $region24: #{tpu_custom_call.1} parent=1 // pred_region
      %s127 = ssub.s32 128, 128
      %128 = vsyncadd [#allocation4], %s127
      %s130 = sshll.u32 [#allocation7], 4
      %s131 = int_to_ptr.vmem [resolvable:$true] %s130
      %133 = dma.vmem_to_hbm [thread:$0]  %s131, 128, %s3, [#allocation4]
    $region25: #{tpu_custom_call.1} parent=1 // pred_fallthru
      _
    // Predicated region
    $region26: #{tpu_custom_call.1} parent=1 // pred_check
      _
    $region27: #{tpu_custom_call.1} parent=1 // pred_check_branch
      %135 = sbr.rel (0) target = $region29
    $region28: #{tpu_custom_call.1} parent=1 // pred_region
      %136 = dma.done [#allocation4], 128
    $region29: #{tpu_custom_call.1} parent=1 // pred_fallthru
      _
    %137 = vsyncpa [#allocation3], 1
    %138 = vsyncpa [#allocation6], 1
    %139 = vsyncpa [#allocation4], 1

</llo_original>
